<compile_context>
chip_gen: v7x
topology: tpu7x:2x2x1
jax: 0.10.0
libtpu: 0.0.40
codegen_flags: <defaults>
</compile_context>

<pallas_src>
import functools
import math

import jax
import jax.numpy as jnp
from jax.experimental import pallas as pl
from jax.experimental.pallas import tpu as pltpu


# ----------------------------------------------------------------------------
# Options (mirrors the fields the PyTorch module reads from `opts`)
# ----------------------------------------------------------------------------
class Opts:
    num_classes = 4            # input channels of input_sem
    num_planes = 4
    mpi_encoder_features = 32
    embedding_size = 8
    num_layers = 3


# 3x3 tap enumeration shared by the kernel, the mask builder and the weight
# packing:  t = (dy + 1) * 3 + (dx + 1), matching w.reshape(9, Cin, Cout).
_TAPS = [(dy, dx) for dy in (-1, 0, 1) for dx in (-1, 0, 1)]
_NONCENTER = [t for t, (dy, dx) in enumerate(_TAPS) if not (dy == 0 and dx == 0)]
_MASK_IDX = {t: k for k, t in enumerate(_NONCENTER)}


# ----------------------------------------------------------------------------
# pltpu.roll convention probe (tiny one-off kernel, run once before tracing)
# ----------------------------------------------------------------------------
def _probe_roll_convention():
    """Returns True iff pltpu.roll follows jnp.roll semantics
    (out[i] = x[(i - shift) % n]); False if it is the opposite rotation."""
    x = jnp.arange(16 * 128, dtype=jnp.float32).reshape(16, 128)

    def probe_kernel(x_ref, o_ref):
        o_ref[...] = pltpu.roll(x_ref[...], shift=1, axis=0)

    out = pl.pallas_call(
        probe_kernel,
        out_shape=jax.ShapeDtypeStruct((16, 128), jnp.float32),
    )(x)
    if bool(jnp.array_equal(out, jnp.roll(x, 1, axis=0))):
        return True
    if bool(jnp.array_equal(out, jnp.roll(x, -1, axis=0))):
        return False
    raise RuntimeError("unexpected pltpu.roll semantics")


# ----------------------------------------------------------------------------
# Boundary masks for the 8 non-center taps, built on the host (constant-folded
# by XLA; zero in-kernel iota / div / mod work).
# ----------------------------------------------------------------------------
def _build_tap_masks(B, H, W, c):
    M = B * H * W
    r = jnp.arange(M, dtype=jnp.int32)
    y = (r // W) % H          # row within the image (folded batch is handled
    x = r % W                 # by the modulo: cross-image taps get masked)
    rows = []
    for dy, dx in _TAPS:
        if dy == 0 and dx == 0:
            continue
        ok = jnp.ones((M,), dtype=bool)
        if dy == -1:
            ok = ok & (y >= 1)
        if dy == 1:
            ok = ok & (y <= H - 2)
        if dx == -1:
            ok = ok & (x >= 1)
        if dx == 1:
            ok = ok & (x <= W - 2)
        rows.append(ok)
    m = jnp.stack(rows).astype(jnp.float32)                 # (8, M)
    return jnp.broadcast_to(m[:, :, None], (8, M, c))       # (8, M, c)


# ----------------------------------------------------------------------------
# Fused Pallas kernel: whole forward pass, batch folded into M = B*H*W
# ----------------------------------------------------------------------------
def _make_fused_kernel(B, H, W, c_out, roll_like_jnp):
    M = B * H * W

    def _shift(off):
        # We want shifted[r] == act[(r + off) % M].
        return (-off) % M if roll_like_jnp else off % M

    def kernel(x_ref, masks_ref, w0_ref, b0_ref, w9_ref, b9_ref,
               h0w_ref, h0b_ref, h1w_ref, h1b_ref,
               bn1s_ref, bn1t_ref, bn2s_ref, bn2t_ref, o_ref):

        def conv(act, w_taps, bias):
            """3x3 / stride 1 / pad 1 conv on the flat (M, Cin) activation.

            act:    (M, Cin)  f32 value
            w_taps: (9, Cin, Cout) f32 value (tap-major, row-major 3x3)
            bias:   (1, Cout) f32 value
            Returns (M, Cout) f32.
            """
            cin = act.shape[1]
            # Center tap: no roll, no mask.
            acc = jnp.dot(act, w_taps[4], preferred_element_type=jnp.float32)
            for t, (dy, dx) in enumerate(_TAPS):
                if dy == 0 and dx == 0:
                    continue
                off = dy * W + dx
                shifted = pltpu.roll(act, shift=_shift(off), axis=0)  # XLU
                m = masks_ref[_MASK_IDX[t]]                 # (M, Cmax) f32
                if cin != m.shape[1]:
                    m = m[:, 0:cin]
                tap = shifted * m                           # zero out-of-image taps
                acc = acc + jnp.dot(tap, w_taps[t],
                                    preferred_element_type=jnp.float32)
            return acc + bias

        x = x_ref[...]                                      # (M, Cin_pad) f32

        # --- discriptor_net (BaseEncoderDecoder stand-in): 2x conv + ReLU ---
        a = jnp.maximum(conv(x, w0_ref[...], b0_ref[...]), 0.0)
        a = jnp.maximum(conv(a, w9_ref[0], b9_ref[0]), 0.0)

        # --- 4 residual blocks (2 base_res_layers + 2 in the head) ----------
        # ResBlock stand-in: f = relu(conv_b(relu(conv_a(f))) + f)
        for rblk in range(4):
            ia, ib = 1 + 2 * rblk, 2 + 2 * rblk
            hidden = jnp.maximum(conv(a, w9_ref[ia], b9_ref[ia]), 0.0)
            a = jnp.maximum(conv(hidden, w9_ref[ib], b9_ref[ib]) + a, 0.0)

        # --- BN(enc) -> ConvBlock(enc->mid)+ReLU -> BN(mid) -> ConvBlock ----
        a = a * bn1s_ref[...] + bn1t_ref[...]
        a = jnp.maximum(conv(a, h0w_ref[...], h0b_ref[...]), 0.0)
        a = a * bn2s_ref[...] + bn2t_ref[...]
        a = conv(a, h1w_ref[...], h1b_ref[...])             # no ReLU

        # Single 64 KiB store of the final (M, c_out) result.
        o_ref[...] = a

    return kernel


# ----------------------------------------------------------------------------
# Deterministic parameter construction
# ----------------------------------------------------------------------------
def _conv_params(key, cin, cout):
    kw, kb = jax.random.split(key)
    w = jax.random.normal(kw, (3, 3, cin, cout), jnp.float32) * (
        1.0 / math.sqrt(9 * cin))
    b = jax.random.normal(kb, (cout,), jnp.float32) * 0.01
    return w, b


def _bn_params(key, c):
    kg, kb, km, kv = jax.random.split(key, 4)
    gamma = 1.0 + 0.05 * jax.random.normal(kg, (c,), jnp.float32)
    beta = 0.05 * jax.random.normal(kb, (c,), jnp.float32)
    mean = 0.05 * jax.random.normal(km, (c,), jnp.float32)
    var = 1.0 + 0.05 * jnp.abs(jax.random.normal(kv, (c,), jnp.float32))
    eps = 1e-5
    scale = gamma / jnp.sqrt(var + eps)
    shift = beta - mean * scale
    return scale, shift


def make_params(opts, seed=0):
    enc = opts.mpi_encoder_features
    cin = opts.num_classes
    total_seg = (opts.num_layers - 1) * opts.embedding_size
    total_alpha = opts.num_planes
    total_beta = opts.num_planes * opts.num_layers
    total_out = total_seg + total_alpha + total_beta
    mid = total_out // 2

    key = jax.random.PRNGKey(seed)
    keys = iter(jax.random.split(key, 32))
    raw = {}
    # TODO(synk): BaseEncoderDecoder definition not provided; modeled as two
    # 3x3 conv+ReLU blocks producing `enc` channels at full resolution.
    raw["enc0"] = _conv_params(next(keys), cin, enc)
    raw["enc1"] = _conv_params(next(keys), enc, enc)
    # TODO(synk): ResBlock definition not provided; modeled as
    # relu(x + conv(relu(conv(x)))) with 3x3 convs.
    for name in ("res0", "res1", "res2", "res3"):
        raw[name + "_a"] = _conv_params(next(keys), enc, enc)
        raw[name + "_b"] = _conv_params(next(keys), enc, enc)
    raw["bn1"] = _bn_params(next(keys), enc)
    # TODO(synk): ConvBlock definition not provided; modeled as 3x3 conv
    # (+ReLU unless use_no_relu).
    raw["head0"] = _conv_params(next(keys), enc, mid)
    raw["bn2"] = _bn_params(next(keys), mid)
    raw["head1"] = _conv_params(next(keys), mid, total_out)

    # ---- pack for the fused kernel: tap-major (9, Cin, Cout) f32 weights ----
    def taps(w):                         # (3,3,ci,co) -> (9,ci,co)
        return w.reshape(9, w.shape[2], w.shape[3])

    # conv0 weight rows zero-padded so the kernel input can use `enc` lanes.
    w0 = jnp.pad(taps(raw["enc0"][0]), ((0, 0), (0, enc - cin), (0, 0)))

    names9 = ["enc1", "res0_a", "res0_b", "res1_a", "res1_b",
              "res2_a", "res2_b", "res3_a", "res3_b"]
    w9 = jnp.stack([taps(raw[n][0]) for n in names9])        # (9, 9, enc, enc)
    b9 = jnp.stack([raw[n][1].reshape(1, enc) for n in names9])  # (9, 1, enc)

    packed = (
        w0, raw["enc0"][1].reshape(1, enc),
        w9, b9,
        taps(raw["head0"][0]), raw["head0"][1].reshape(1, mid),
        taps(raw["head1"][0]), raw["head1"][1].reshape(1, total_out),
        raw["bn1"][0].reshape(1, enc), raw["bn1"][1].reshape(1, enc),
        raw["bn2"][0].reshape(1, mid), raw["bn2"][1].reshape(1, mid),
    )
    return {"raw": raw, "packed": packed}


# ----------------------------------------------------------------------------
# Output splitting (matches the PyTorch channel slicing + view()s)
# ----------------------------------------------------------------------------
def _split_outputs(out_nhwc, opts):
    b, h, w, _ = out_nhwc.shape
    n_alpha = opts.num_planes
    n_beta = opts.num_planes * opts.num_layers
    n_seg = (opts.num_layers - 1) * opts.embedding_size

    alphas = out_nhwc[..., -n_alpha:]
    seg = out_nhwc[..., n_beta:n_beta + n_seg]
    beta = out_nhwc[..., :n_beta]

    alpha = jnp.transpose(alphas, (0, 3, 1, 2)).reshape(
        b, opts.num_planes, 1, h, w)
    seg_out = jnp.transpose(seg, (0, 3, 1, 2)).reshape(
        b, opts.num_layers - 1, opts.embedding_size, h, w)
    beta_out = jnp.transpose(beta, (0, 3, 1, 2)).reshape(
        b, opts.num_planes, opts.num_layers, h, w)
    return alpha, seg_out, beta_out


# ----------------------------------------------------------------------------
# Forward pass (Pallas)
# ----------------------------------------------------------------------------
def mul_layer_conv_network_forward(input_sem_nchw, params, opts,
                                   roll_like_jnp=True):
    """input_sem_nchw: (B, num_classes, H, W) float32 (PyTorch NCHW layout)."""
    b, cin, h, w = input_sem_nchw.shape
    c_enc = opts.mpi_encoder_features
    n_seg = (opts.num_layers - 1) * opts.embedding_size
    n_alpha = opts.num_planes
    n_beta = opts.num_planes * opts.num_layers
    c_out = n_seg + n_alpha + n_beta
    M = b * h * w

    packed = params["packed"]
    c_in_pad = packed[0].shape[1]          # conv0 weight is (9, c_in_pad, enc)

    # NCHW -> flat (B*H*W, C) row-major; zero-pad channels to match conv0's
    # zero-padded weight rows (uniform 32-lane activations).
    x = jnp.transpose(input_sem_nchw, (0, 2, 3, 1)).reshape(M, cin)
    if c_in_pad > cin:
        x = jnp.pad(x, ((0, 0), (0, c_in_pad - cin)))

    masks = _build_tap_masks(b, h, w, max(c_in_pad, c_enc))   # (8, M, 32)

    kernel = _make_fused_kernel(b, h, w, c_out, roll_like_jnp)
    out_flat = pl.pallas_call(
        kernel,
        out_shape=jax.ShapeDtypeStruct((M, c_out), jnp.float32),
    )(x, masks, *packed)

    out = out_flat.reshape(b, h, w, c_out)     # pure metadata reshape
    return _split_outputs(out, opts)


# ----------------------------------------------------------------------------
# Pure-JAX/XLA reference of the same (stand-in) network, for validation
# ----------------------------------------------------------------------------
def _reference_forward(input_sem_nchw, params, opts):
    raw = params["raw"]
    x = jnp.transpose(input_sem_nchw, (0, 2, 3, 1))           # NHWC

    def conv(x, name):
        w, bias = raw[name]
        y = jax.lax.conv_general_dilated(
            x, w, window_strides=(1, 1), padding=((1, 1), (1, 1)),
            dimension_numbers=("NHWC", "HWIO", "NHWC"),
            precision=jax.lax.Precision.HIGHEST)
        return y + bias

    a = jnp.maximum(conv(x, "enc0"), 0.0)
    a = jnp.maximum(conv(a, "enc1"), 0.0)
    for n in ("res0", "res1", "res2", "res3"):
        hidden = jnp.maximum(conv(a, n + "_a"), 0.0)
        a = jnp.maximum(conv(hidden, n + "_b") + a, 0.0)
    s, t = raw["bn1"]
    a = a * s + t
    a = jnp.maximum(conv(a, "head0"), 0.0)
    s, t = raw["bn2"]
    a = a * s + t
    return conv(a, "head1")                                   # (B,H,W,c_out)


# ----------------------------------------------------------------------------
# Main
# ----------------------------------------------------------------------------
if __name__ == "__main__":
    opts = Opts()
    B, H, W = 2, 16, 16

    key = jax.random.PRNGKey(0)
    input_sem = jax.random.normal(key, (B, opts.num_classes, H, W), jnp.float32)

    params = make_params(opts, seed=0)

    # Pin down the pltpu.roll rotation convention once (tiny probe kernel).
    roll_like_jnp = _probe_roll_convention()

    fwd = jax.jit(functools.partial(mul_layer_conv_network_forward,
                                    opts=opts, roll_like_jnp=roll_like_jnp))
    alpha, seg, beta = fwd(input_sem, params)
    jax.block_until_ready((alpha, seg, beta))

    assert alpha.shape == (B, opts.num_planes, 1, H, W), alpha.shape
    assert seg.shape == (B, opts.num_layers - 1, opts.embedding_size, H, W), seg.shape
    assert beta.shape == (B, opts.num_planes, opts.num_layers, H, W), beta.shape
    assert all(bool(jnp.isfinite(t).all()) for t in (alpha, seg, beta))

    # Numerics vs the pure-JAX/XLA reference of the same stand-in network.
    ref_alpha, ref_seg, ref_beta = _split_outputs(
        _reference_forward(input_sem, params, opts), opts)
    for name, got, ref in (("alpha", alpha, ref_alpha),
                           ("seg", seg, ref_seg),
                           ("beta", beta, ref_beta)):
        err = float(jnp.max(jnp.abs(got - ref)))
        assert err < 5e-2, f"{name}: max abs err {err}"

    print("KERNEL_OK")
</pallas_src>

<mosaic_0001>
module attributes {stable_mosaic.version = 11 : i64} {
  func.func @probe_kernel(%arg0: memref<16x128xf32, #tpu.memory_space<vmem>>, %arg1: memref<16x128xf32, #tpu.memory_space<vmem>>) attributes {dimension_semantics = [], scalar_prefetch = 0 : i64, scratch_operands = 0 : i64, tpu.core_type = #tpu.core_type<tc>} {
    %c0 = arith.constant 0 : index
    %c0_0 = arith.constant 0 : index
    %0 = vector.load %arg0[%c0, %c0_0] : memref<16x128xf32, #tpu.memory_space<vmem>>, vector<16x128xf32>
    %c1_i32 = arith.constant 1 : i32
    %1 = tpu.dynamic_rotate %0 by %c1_i32 dim 0 : vector<16x128xf32>, i32 -> vector<16x128xf32>
    %c0_1 = arith.constant 0 : index
    %c0_2 = arith.constant 0 : index
    %2 = vector.load %arg1[%c0_1, %c0_2] : memref<16x128xf32, #tpu.memory_space<vmem>>, vector<16x128xf32>
    tpu.vector_store %arg1[%c0_1, %c0_2], %1 {strides = array<i32>} : memref<16x128xf32, #tpu.memory_space<vmem>>, vector<16x128xf32>,
    return
  }
}

</mosaic_0001>

<llo_original>
// kernel: tpu_custom_call.1
$region0: #{tpu_custom_call.1}
  #allocation0 [shape = 'u32[]', space=smem, size = 0x4, offset = 0x4, fixed_abs, tag = 'smem constant byte address 0x4 - core index']
  #allocation1 [shape = 'u32[144,128]{1,0:T(1,128)}', space=vmem, size = 0x12000, scoped, tag = 'internal scratch']
  %s0 = inlined_call_operand.hbm [shape: f32[16,128], index: 0, kind: input, shape index: {}]
  %s1 = inlined_call_operand.hbm [shape: f32[16,128], index: 1, kind: output, shape index: {}]
  %s2 = sld [smem:[#allocation0]]
  $region18: #{tpu_custom_call.1} parent=0
    _
  %s4 = ssub.s32 1, %s2
  %s5 = scalar_select 0, %s4, %s2
  $region1: #{tpu_custom_call.1} parent=0
    #allocation2 [shape = 'u8[8192]{0}', space=vmem, size = 0x2000, scoped, tag = 'input window, operand 0, single buffered']
    #allocation3 [shape = 's32[1]{0}', space=sflag, size = 0x4, scoped, tag = 'scoped memory for tpu_custom_call.1']
    #allocation4 [shape = 's32[1]{0}', space=sflag, size = 0x4, scoped, tag = 'scoped memory for tpu_custom_call.1']
    #allocation5 [shape = 'u8[8192]{0}', space=vmem, size = 0x2000, scoped, tag = 'output window, operand 0, single buffered']
    %6 = vsyncpa [#allocation3], 0
    %7 = vsyncpa [#allocation4], 0
    // Predicated region
    $region2: #{tpu_custom_call.1} parent=1 // pred_check
      _
    $region3: #{tpu_custom_call.1} parent=1 // pred_check_branch
      %9 = sbr.rel (0) target = $region5
    $region4: #{tpu_custom_call.1} parent=1 // pred_region
      %s11 = ssub.s32 256, 256
      %12 = vsyncadd [#allocation3], %s11
      %s13 = sshll.u32 [#allocation2], 4
      %s14 = int_to_ptr.vmem [resolvable:$true] %s13
      %19 = dma.hbm_to_vmem [thread:$0]  %s0, 256, %s14, [#allocation3], 128, 128, 8
    $region5: #{tpu_custom_call.1} parent=1 // pred_fallthru
      _
    // Predicated region
    $region6: #{tpu_custom_call.1} parent=1 // pred_check
      _
    $region7: #{tpu_custom_call.1} parent=1 // pred_check_branch
      %21 = sbr.rel (0) target = $region9
    $region8: #{tpu_custom_call.1} parent=1 // pred_region
      %22 = dma.done [#allocation3], 256
    $region9: #{tpu_custom_call.1} parent=1 // pred_fallthru
      _
    %v23 = vld [vmem:[#allocation2] sm:$0xff]
    %v24 = vld [vmem:[#allocation2 + $0x8] sm:$0xff]
    %v25 = vrot.slane %v23, 7
    %v26 = vrot.slane %v24, 7
    %v27 = vlaneseq
    %v28 = vshrl.u32 %v27, 7
    %vm29 = vcmp.lt.s32.totalorder %v28, 1
    %v30 = vsel %vm29, %v25, %v26
    %v31 = vsel %vm29, %v26, %v25
    %32 = vst [vmem:[#allocation5] sm:$0xff] %v31
    %33 = vst [vmem:[#allocation5 + $0x8] sm:$0xff] %v30
    // Predicated region
    $region10: #{tpu_custom_call.1} parent=1 // pred_check
      _
    $region11: #{tpu_custom_call.1} parent=1 // pred_check_branch
      %35 = sbr.rel (0) target = $region13
    $region12: #{tpu_custom_call.1} parent=1 // pred_region
      %s37 = ssub.s32 256, 256
      %38 = vsyncadd [#allocation4], %s37
      %s39 = sshll.u32 [#allocation5], 4
      %s40 = int_to_ptr.vmem [resolvable:$true] %s39
      %45 = dma.vmem_to_hbm [thread:$0]  %s40, 256, %s1, [#allocation4], 128, 128, 8
    $region13: #{tpu_custom_call.1} parent=1 // pred_fallthru
      _
    // Predicated region
    $region14: #{tpu_custom_call.1} parent=1 // pred_check
      _
    $region15: #{tpu_custom_call.1} parent=1 // pred_check_branch
      %47 = sbr.rel (0) target = $region17
    $region16: #{tpu_custom_call.1} parent=1 // pred_region
      %48 = dma.done [#allocation4], 256
    $region17: #{tpu_custom_call.1} parent=1 // pred_fallthru
      _
    %49 = vsyncpa [#allocation3], 1
    %50 = vsyncpa [#allocation4], 1

</llo_original>
